<compile_context>
chip_gen: v7x
topology: tpu7x:2x2x1
jax: 0.10.0
libtpu: 0.0.40
codegen_flags: <defaults>
</compile_context>

<pallas_src>
import functools

import jax
import jax.numpy as jnp
from jax import lax
from jax.experimental import pallas as pl
from jax.experimental.pallas import tpu as pltpu


def _default_vmem_limit_bytes():
    """Generation-aware scoped-VMEM limit, leaving double-buffer headroom."""
    try:
        cap = int(pltpu.get_tpu_info().vmem_capacity_bytes)
    except Exception:
        cap = 64 << 20                      # conservative (v7x-sized) fallback
    # ~75% of physical: 48 MiB on v7x (64 MiB/TC), 96 MiB on v5e/v6e (128 MiB).
    return int(min((cap * 3) // 4, 96 << 20))


def _pick_block_b(B, N, C, x_itemsize, c_itemsize, vmem_budget):
    """Largest divisor of B whose per-step VMEM residency fits the budget."""
    per_b = (N * C * x_itemsize * 2          # x block (double-buffered)
             + N * C * x_itemsize * 2        # o block (double-buffered)
             + N * 3 * C * c_itemsize        # qkv VMEM scratch
             + N * 3 * C * 4                 # f32 qkv value
             + N * N * (8 + c_itemsize)      # f32 scores + exp probs (+cast)
             + N * C * 4)                    # f32 merged head outputs
    cap = max(1, vmem_budget // max(per_b, 1))
    if B > 1:
        cap = min(cap, (B + 1) // 2)         # >=2 grid steps (v7x megacore)
    cap = min(cap, B)
    # TODO(synk): for prime B this degrades toward block_b=1; pad B (or use a
    # masked partial last block) if that ever matters for a real workload.
    for d in range(cap, 0, -1):
        if B % d == 0:
            return d
    return 1


def _attention_kernel(x_ref, wqkv_ref, o_ref, qkv_ref, *,
                      num_heads, compute_dtype, approx_recip):
    # x_ref block: (Bt, N, C) native dtype; wqkv_ref: (C, 3C) compute_dtype;
    # o_ref: (Bt, N, C); qkv_ref: (Bt, N, 3C) compute_dtype VMEM scratch.
    Bt, N, C = x_ref.shape
    hd = C // num_heads

    # Cast x to the MXU compute dtype INSIDE the kernel (hides under DMA).
    x = x_ref[...].astype(compute_dtype)                   # (Bt, N, C)
    w = wqkv_ref[...]                                      # (C, 3C)

    # Fused QKV projection (softmax scale pre-folded into the Wq columns).
    # Expressed as one tall 2-D matmul when the flatten is a free relayout.
    if N % 8 == 0:
        qkv = lax.dot_general(
            x.reshape(Bt * N, C), w,
            dimension_numbers=(((1,), (0,)), ((), ())),
            preferred_element_type=jnp.float32).reshape(Bt, N, 3 * C)
    else:
        qkv = lax.dot_general(
            x, w,
            dimension_numbers=(((2,), (0,)), ((), ())),
            preferred_element_type=jnp.float32)            # (Bt, N, 3C) f32

    # Spill qkv once (single lane-dense store); per-head slices are reloaded
    # from the Ref so live ranges stay small across the unrolled head loop.
    qkv_ref[...] = qkv.astype(compute_dtype)

    head_outs = []
    # TODO(synk): switch to lax.fori_loop with pl.ds slices on qkv_ref if
    # num_heads ever grows large enough for the static unroll to bloat code.
    for h in range(num_heads):
        qh = qkv_ref[:, :, 0 * C + h * hd: 0 * C + (h + 1) * hd]  # (Bt,N,hd)
        kh = qkv_ref[:, :, 1 * C + h * hd: 1 * C + (h + 1) * hd]
        vh = qkv_ref[:, :, 2 * C + h * hd: 2 * C + (h + 1) * hd]

        # Scores: contract the head dim of q and k directly (transposed-RHS
        # matmul folded into the MXU op; no materialized k.T).
        s = lax.dot_general(
            qh, kh,
            dimension_numbers=(((2,), (2,)), ((0,), (0,))),
            preferred_element_type=jnp.float32)            # (Bt, N, N) f32

        # Numerically stable softmax; normalization deferred to the
        # (Bt, N, hd) output instead of dividing the (Bt, N, N) matrix.
        m = jnp.max(s, axis=-1, keepdims=True)
        p = jnp.exp(s - m)                                 # unnormalized
        l = jnp.sum(p, axis=-1, keepdims=True)             # (Bt, N, 1)

        # attn_drop has drop ratio 0.0 -> identity (no-op).

        oh = lax.dot_general(
            p.astype(compute_dtype), vh,
            dimension_numbers=(((2,), (1,)), ((0,), (0,))),
            preferred_element_type=jnp.float32)            # (Bt, N, hd) f32
        head_outs.append(oh * pl.reciprocal(l, approx=approx_recip))

    # Merge heads in-register and issue ONE full-width, lane-dense store.
    if num_heads == 1:
        merged = head_outs[0]
    else:
        merged = jnp.concatenate(head_outs, axis=-1)       # (Bt, N, C) f32
    o_ref[...] = merged.astype(o_ref.dtype)


def attention_forward(x, wq, wk, wv, *, num_heads=1, qk_scale=None,
                      compute_dtype=jnp.bfloat16, block_b=None):
    """x: (B, N, C).  wq/wk/wv: (C_out, C_in) conv1x1 weights (no bias).

    compute_dtype: dtype fed to the MXU matmuls (default bfloat16); the
    accumulation and softmax math stay in float32.  Pass jnp.float32 for a
    numerically exact path.
    """
    B, N, C = x.shape
    assert C % num_heads == 0, "C must be divisible by num_heads"
    head_dim = C // num_heads
    scale = float(qk_scale) if qk_scale is not None else head_dim ** (-0.5)
    compute_dtype = jnp.dtype(compute_dtype)

    # One-time weight prep: fused, pre-transposed QKV weight with the softmax
    # scale folded into the Wq columns, so the kernel does a single
    # x @ [scale*Wq^T | Wk^T | Wv^T] and never touches the score scale.
    w_qkv = jnp.concatenate([wq.T * scale, wk.T, wv.T],
                            axis=-1).astype(compute_dtype)        # (C, 3C)

    vmem_limit = _default_vmem_limit_bytes()
    if block_b is None:
        block_b = _pick_block_b(B, N, C,
                                x_itemsize=x.dtype.itemsize,
                                c_itemsize=compute_dtype.itemsize,
                                vmem_budget=(vmem_limit * 3) // 5)
    assert B % block_b == 0, "block_b must divide B"
    grid = (B // block_b,)

    kernel = functools.partial(
        _attention_kernel,
        num_heads=num_heads,
        compute_dtype=compute_dtype,
        approx_recip=(compute_dtype != jnp.dtype(jnp.float32)))

    return pl.pallas_call(
        kernel,
        out_shape=jax.ShapeDtypeStruct((B, N, C), x.dtype),
        grid_spec=pltpu.PrefetchScalarGridSpec(
            num_scalar_prefetch=0,
            grid=grid,
            in_specs=[
                pl.BlockSpec((block_b, N, C), lambda b: (b, 0, 0)),   # x (native dtype)
                pl.BlockSpec((C, 3 * C), lambda b: (0, 0)),           # fused Wqkv
            ],
            out_specs=pl.BlockSpec((block_b, N, C), lambda b: (b, 0, 0)),
            scratch_shapes=[pltpu.VMEM((block_b, N, 3 * C), compute_dtype)],
        ),
        compiler_params=pltpu.CompilerParams(
            dimension_semantics=("parallel",),
            vmem_limit_bytes=vmem_limit,
        ),
    )(x, w_qkv)


def attention_reference(x, wq, wk, wv, *, num_heads=1, qk_scale=None):
    """Pure-JAX reference mirroring the PyTorch forward."""
    B, N, C = x.shape
    hd = C // num_heads
    scale = qk_scale if qk_scale is not None else hd ** (-0.5)

    def proj(w):
        p = jnp.einsum('bnc,oc->bno', x, w)               # (B, N, C)
        return p.reshape(B, N, num_heads, hd).transpose(0, 2, 1, 3)

    q, k, v = proj(wq), proj(wk), proj(wv)                # (B, H, N, hd)
    attn = jnp.einsum('bhnd,bhmd->bhnm', q, k) * scale
    attn = jax.nn.softmax(attn, axis=-1)
    out = jnp.einsum('bhnm,bhmd->bhnd', attn, v)          # (B, H, N, hd)
    return out.transpose(0, 2, 1, 3).reshape(B, N, C)


if __name__ == "__main__":
    # Small shapes consistent with the module's forward: x is (B, N, C).
    B, N, C = 2, 8, 32
    num_heads = 1

    key = jax.random.PRNGKey(0)
    kx, kq, kk, kv = jax.random.split(key, 4)

    x = jax.random.normal(kx, (B, N, C), dtype=jnp.float32)
    # Deterministic synthetic conv1x1 weights, shape (C_out, C_in).
    wq = jax.random.normal(kq, (C, C), dtype=jnp.float32) * 0.1
    wk = jax.random.normal(kk, (C, C), dtype=jnp.float32) * 0.1
    wv = jax.random.normal(kv, (C, C), dtype=jnp.float32) * 0.1

    ref = attention_reference(x, wq, wk, wv, num_heads=num_heads)

    # Default path: bf16 MXU operands, f32 accumulate / f32 softmax.
    out = attention_forward(x, wq, wk, wv, num_heads=num_heads)
    out = jax.block_until_ready(out)
    assert out.shape == (B, N, C)
    assert jnp.allclose(out, ref, atol=5e-2, rtol=5e-2), "bf16 mismatch vs ref"

    # f32-exact path (exact reciprocal, f32 MXU operands): tight tolerance.
    out_f32 = jax.block_until_ready(
        attention_forward(x, wq, wk, wv, num_heads=num_heads,
                          compute_dtype=jnp.float32))
    assert out_f32.shape == (B, N, C)
    assert jnp.allclose(out_f32, ref, atol=1e-4, rtol=1e-4), \
        "f32 mismatch vs ref"

    # Multi-head path (exercises the in-register head merge + single store).
    B2, N2, C2, H2 = 4, 16, 32, 2
    k2 = jax.random.split(jax.random.PRNGKey(1), 4)
    x2 = jax.random.normal(k2[0], (B2, N2, C2), dtype=jnp.float32)
    wq2 = jax.random.normal(k2[1], (C2, C2), dtype=jnp.float32) * 0.1
    wk2 = jax.random.normal(k2[2], (C2, C2), dtype=jnp.float32) * 0.1
    wv2 = jax.random.normal(k2[3], (C2, C2), dtype=jnp.float32) * 0.1
    ref2 = attention_reference(x2, wq2, wk2, wv2, num_heads=H2)
    out2 = jax.block_until_ready(
        attention_forward(x2, wq2, wk2, wv2, num_heads=H2))
    assert out2.shape == (B2, N2, C2)
    assert jnp.allclose(out2, ref2, atol=5e-2, rtol=5e-2), \
        "multi-head mismatch vs ref"

    print("KERNEL_OK")
</pallas_src>

<mosaic_0001>
module attributes {stable_mosaic.version = 11 : i64} {
  func.func @_attention_kernel(%arg0: i32, %arg1: memref<1x8x32xf32, #tpu.memory_space<vmem>>, %arg2: memref<32x96xbf16, #tpu.memory_space<vmem>>, %arg3: memref<1x8x32xf32, #tpu.memory_space<vmem>>, %arg4: memref<1x8x96xbf16, #tpu.memory_space<vmem>>) attributes {dimension_semantics = [#tpu.dimension_semantics<parallel>], iteration_bounds = array<i64: 2>, scalar_prefetch = 0 : i64, scratch_operands = 1 : i64, tpu.core_type = #tpu.core_type<tc>, window_params = [{transform_indices = @transform_0, window_bounds = array<i64: 1, 8, 32>}, {pipeline_mode = #tpu.pipeline_mode<synchronous>, transform_indices = @transform_1, window_bounds = array<i64: 32, 96>}, {transform_indices = @transform_2, window_bounds = array<i64: 1, 8, 32>}]} {
    %c0 = arith.constant 0 : index
    %c0_0 = arith.constant 0 : index
    %c0_1 = arith.constant 0 : index
    %0 = vector.load %arg1[%c0, %c0_0, %c0_1] : memref<1x8x32xf32, #tpu.memory_space<vmem>>, vector<1x8x32xf32>
    %1 = arith.truncf %0 : vector<1x8x32xf32> to vector<1x8x32xbf16>
    %c0_2 = arith.constant 0 : index
    %c0_3 = arith.constant 0 : index
    %2 = vector.load %arg2[%c0_2, %c0_3] : memref<32x96xbf16, #tpu.memory_space<vmem>>, vector<32x96xbf16>
    %3 = vector.shape_cast %1 : vector<1x8x32xbf16> to vector<8x32xbf16>
    %cst = arith.constant dense<0.000000e+00> : vector<8x96xf32>
    %4 = tpu.matmul %3, %2, %cst {dimension_numbers = #tpu.dot_dimension_numbers<[1], [0], [0], [1], [0, 0, 1, 1], [], []>} : vector<8x32xbf16>, vector<32x96xbf16>, vector<8x96xf32> -> vector<8x96xf32>
    %5 = vector.shape_cast %4 : vector<8x96xf32> to vector<1x8x96xf32>
    %6 = arith.truncf %5 : vector<1x8x96xf32> to vector<1x8x96xbf16>
    %c0_4 = arith.constant 0 : index
    %c0_5 = arith.constant 0 : index
    %c0_6 = arith.constant 0 : index
    %7 = vector.load %arg4[%c0_4, %c0_5, %c0_6] : memref<1x8x96xbf16, #tpu.memory_space<vmem>>, vector<1x8x96xbf16>
    tpu.vector_store %arg4[%c0_4, %c0_5, %c0_6], %6 {strides = array<i32>} : memref<1x8x96xbf16, #tpu.memory_space<vmem>>, vector<1x8x96xbf16>,
    %c0_7 = arith.constant 0 : index
    %c0_8 = arith.constant 0 : index
    %c0_9 = arith.constant 0 : index
    %8 = vector.load %arg4[%c0_7, %c0_8, %c0_9] : memref<1x8x96xbf16, #tpu.memory_space<vmem>>, vector<1x8x32xbf16>
    %c0_10 = arith.constant 0 : index
    %c0_11 = arith.constant 0 : index
    %c32 = arith.constant 32 : index
    %9 = vector.load %arg4[%c0_10, %c0_11, %c32] : memref<1x8x96xbf16, #tpu.memory_space<vmem>>, vector<1x8x32xbf16>
    %c0_12 = arith.constant 0 : index
    %c0_13 = arith.constant 0 : index
    %c64 = arith.constant 64 : index
    %10 = vector.load %arg4[%c0_12, %c0_13, %c64] : memref<1x8x96xbf16, #tpu.memory_space<vmem>>, vector<1x8x32xbf16>
    %cst_14 = arith.constant dense<0.000000e+00> : vector<1x8x8xf32>
    %11 = tpu.matmul %8, %9, %cst_14 {dimension_numbers = #tpu.dot_dimension_numbers<[2], [2], [1], [1], [0, 0, 0, 1, 1, 1], [0], [0]>} : vector<1x8x32xbf16>, vector<1x8x32xbf16>, vector<1x8x8xf32> -> vector<1x8x8xf32>
    %cst_15 = arith.constant dense<0xFF800000> : vector<1x8xf32>
    %12 = vector.multi_reduction <maximumf>, %11, %cst_15 [2] : vector<1x8x8xf32> to vector<1x8xf32>
    %13 = vector.shape_cast %12 : vector<1x8xf32> to vector<1x8x1xf32>
    %14 = vector.broadcast %13 : vector<1x8x1xf32> to vector<1x8x8xf32>
    %15 = arith.subf %11, %14 : vector<1x8x8xf32>
    %16 = math.exp %15 : vector<1x8x8xf32>
    %cst_16 = arith.constant dense<0.000000e+00> : vector<1x8xf32>
    %17 = vector.multi_reduction <add>, %16, %cst_16 [2] : vector<1x8x8xf32> to vector<1x8xf32>
    %18 = vector.shape_cast %17 : vector<1x8xf32> to vector<1x8x1xf32>
    %19 = arith.truncf %16 : vector<1x8x8xf32> to vector<1x8x8xbf16>
    %cst_17 = arith.constant dense<0.000000e+00> : vector<1x8x32xf32>
    %20 = tpu.matmul %19, %10, %cst_17 {dimension_numbers = #tpu.dot_dimension_numbers<[2], [1], [1], [2], [0, 0, 0, 1, 1, 2], [0], [0]>} : vector<1x8x8xbf16>, vector<1x8x32xbf16>, vector<1x8x32xf32> -> vector<1x8x32xf32>
    %21 = tpu.reciprocal %18 {approx = true} : vector<1x8x1xf32> -> vector<1x8x1xf32>
    %22 = vector.broadcast %21 : vector<1x8x1xf32> to vector<1x8x32xf32>
    %23 = arith.mulf %20, %22 : vector<1x8x32xf32>
    %c0_18 = arith.constant 0 : index
    %c0_19 = arith.constant 0 : index
    %c0_20 = arith.constant 0 : index
    %24 = vector.load %arg3[%c0_18, %c0_19, %c0_20] : memref<1x8x32xf32, #tpu.memory_space<vmem>>, vector<1x8x32xf32>
    tpu.vector_store %arg3[%c0_18, %c0_19, %c0_20], %23 {strides = array<i32>} : memref<1x8x32xf32, #tpu.memory_space<vmem>>, vector<1x8x32xf32>,
    return
  }
  func.func @transform_0(%arg0: i32) -> (i32, i32, i32) {
    %c0_i32 = arith.constant 0 : i32
    %c0_i32_0 = arith.constant 0 : i32
    %c0_i32_1 = arith.constant 0 : i32
    return %arg0, %c0_i32, %c0_i32_0 : i32, i32, i32
  }
  func.func @transform_1(%arg0: i32) -> (i32, i32) {
    %c0_i32 = arith.constant 0 : i32
    %c0_i32_0 = arith.constant 0 : i32
    %c0_i32_1 = arith.constant 0 : i32
    return %c0_i32, %c0_i32_0 : i32, i32
  }
  func.func @transform_2(%arg0: i32) -> (i32, i32, i32) {
    %c0_i32 = arith.constant 0 : i32
    %c0_i32_0 = arith.constant 0 : i32
    %c0_i32_1 = arith.constant 0 : i32
    return %arg0, %c0_i32, %c0_i32_0 : i32, i32, i32
  }
}

</mosaic_0001>

<llo_original>
// kernel: tpu_custom_call.1
$region0: #{tpu_custom_call.1}
  #allocation0 [shape = 'u32[]', space=smem, size = 0x4, offset = 0x4, fixed_abs, tag = 'smem constant byte address 0x4 - core index']
  #allocation1 [shape = 'u32[144,128]{1,0:T(1,128)}', space=vmem, size = 0x12000, scoped, tag = 'internal scratch']
  #allocation2 [shape = 'bf16[1,8,96]{2,1,0:T(8,128)(2,1)}', space=vmem, size = 0x800, scoped, tag = 'scratch operand']
  %s0 = inlined_call_operand.hbm [shape: f32[2,8,32], index: 0, kind: input, shape index: {}]
  %s1 = inlined_call_operand.hbm [shape: bf16[32,96], index: 1, kind: input, shape index: {}]
  %s2 = inlined_call_operand.hbm [shape: f32[2,8,32], index: 2, kind: output, shape index: {}]
  %s3 = sld [smem:[#allocation0]]
  $region49: #{tpu_custom_call.1} parent=0
    _
  %s5 = ssub.s32 1, %s3
  %s6 = scalar_select 0, %s5, %s3
  $region1: #{tpu_custom_call.1} parent=0
    #allocation3 [shape = 'u8[8192]{0}', space=vmem, size = 0x2000, scoped, tag = 'input window, operand 0']
    #allocation4 [shape = 's32[2]{0}', space=sflag, size = 0x8, scoped, tag = 'scoped memory for tpu_custom_call.1']
    #allocation5 [shape = 's32[2]{0}', space=sflag, size = 0x8, scoped, tag = 'scoped memory for tpu_custom_call.1']
    #allocation6 [shape = 'u8[8192]{0}', space=vmem, size = 0x2000, scoped, tag = 'input window, operand 1, single buffered']
    #allocation7 [shape = 's32[1]{0}', space=sflag, size = 0x4, scoped, tag = 'scoped memory for tpu_custom_call.1']
    #allocation8 [shape = 'u8[8192]{0}', space=vmem, size = 0x2000, scoped, tag = 'output window, operand 0']
    %7 = vsyncpa [#allocation4], 0
    %s8 = scalar_lea.sflag [#allocation4], 1
    %9 = vsyncpa %s8, 0
    %10 = vsyncpa [#allocation7], 0
    %11 = vsyncpa [#allocation5], 0
    %s12 = scalar_lea.sflag [#allocation5], 1
    %13 = vsyncpa %s12, 0
    loop: start=0, step=1, limit=4
    $region2: #{tpu_custom_call.1} parent=1 // loop_pre_header
      _
    $region3: #{tpu_custom_call.1} parent=1 // loop_header
      %s15 = sphi 0, %s19
      %p16 = scmp.ge.s32.totalorder %s15, 4
      %s25 = sphi 0, %s27
      %s28 = sphi 0, %s25
      %s29 = sphi 0, %s28
      %s45 = sphi 0, %s29
      %s49 = sphi 0, %s49
      %s51 = sphi 0, %s49
      %s52 = sphi 0, %s51
      %s66 = sphi 0, %s52
      %s72 = sphi 0, %s74
      %s75 = sphi 0, %s72
      %s76 = sphi 0, %s75
      %s92 = sphi 0, %s76
    $region4: #{tpu_custom_call.1} parent=1 // loop_header_branch
      %18 = sbr.rel (%p16) target = $region8
    $region5: #{tpu_custom_call.1} parent=1 // loop_body
      %s20 = ssub.s32 %s15, 1
      %s21 = ssub.s32 %s15, 2
      %s22 = sadd.s32 %s15, 1
      %s23 = ssub.s32 %s15, %s22
      %p24 = scmp.eq.s32.totalorder %s23, 0
      %s26 = sadd.s32 %s25, 1
      %s27 = scalar_select %p24, %s25, %s26
      %p30 = pneg %p24
      %p31 = scmp.eq.s32.totalorder %s15, 1
      %p32 = por %p30, %p31
      %p33 = scmp.ne.s32.totalorder %s25, %s28
      %p34 = scmp.eq.s32.totalorder %s15, 0
      %p35 = por %p33, %p34
      %p36 = scmp.ne.s32.totalorder %s25, %s28
      %p37 = scmp.eq.s32.totalorder %s20, 1
      %p38 = por %p36, %p37
      %p39 = scmp.ne.s32.totalorder %s28, %s29
      %p40 = scmp.eq.s32.totalorder %s20, 0
      %p41 = por %p39, %p40
      %p42 = scmp.ne.s32.totalorder %s28, %s29
      %p43 = scmp.eq.s32.totalorder %s21, 1
      %p44 = por %p42, %p43
      %p46 = scmp.ne.s32.totalorder %s29, %s45
      %p47 = scmp.eq.s32.totalorder %s21, 0
      %p48 = por %p46, %p47
      %s50 = sadd.s32 %s49, 1
      %p53 = scmp.eq.s32.totalorder %s15, 1
      %p54 = scmp.ne.s32.totalorder %s49, %s51
      %p55 = scmp.eq.s32.totalorder %s15, 0
      %p56 = por %p54, %p55
      %p57 = scmp.ne.s32.totalorder %s49, %s51
      %p58 = scmp.eq.s32.totalorder %s20, 1
      %p59 = por %p57, %p58
      %p60 = scmp.ne.s32.totalorder %s51, %s52
      %p61 = scmp.eq.s32.totalorder %s20, 0
      %p62 = por %p60, %p61
      %p63 = scmp.ne.s32.totalorder %s51, %s52
      %p64 = scmp.eq.s32.totalorder %s21, 1
      %p65 = por %p63, %p64
      %p67 = scmp.ne.s32.totalorder %s52, %s66
      %p68 = scmp.eq.s32.totalorder %s21, 0
      %p69 = por %p67, %p68
      %s70 = ssub.s32 %s15, %s22
      %p71 = scmp.eq.s32.totalorder %s70, 0
      %s73 = sadd.s32 %s72, 1
      %s74 = scalar_select %p71, %s72, %s73
      %p77 = pneg %p71
      %p78 = scmp.eq.s32.totalorder %s15, 1
      %p79 = por %p77, %p78
      %p80 = scmp.ne.s32.totalorder %s72, %s75
      %p81 = scmp.eq.s32.totalorder %s15, 0
      %p82 = por %p80, %p81
      %p83 = scmp.ne.s32.totalorder %s72, %s75
      %p84 = scmp.eq.s32.totalorder %s20, 1
      %p85 = por %p83, %p84
      %p86 = scmp.ne.s32.totalorder %s75, %s76
      %p87 = scmp.eq.s32.totalorder %s20, 0
      %p88 = por %p86, %p87
      %p89 = scmp.ne.s32.totalorder %s75, %s76
      %p90 = scmp.eq.s32.totalorder %s21, 1
      %p91 = por %p89, %p90
      %p93 = scmp.ne.s32.totalorder %s76, %s92
      %p94 = scmp.eq.s32.totalorder %s21, 0
      %p95 = por %p93, %p94
      %p96 = scmp.le.s32.totalorder 1, %s15
      %p97 = scmp.lt.s32.totalorder %s15, 3
      %p98 = pnand %p96, %p97
      %p99 = pneg %p98
      // Predicated region
      $region9: #{tpu_custom_call.1} parent=5 // pred_check
        _
      $region10: #{tpu_custom_call.1} parent=5 // pred_check_branch
        %101 = sbr.rel (%p98) target = $region12
      $region11: #{tpu_custom_call.1} parent=5 // pred_region
        %s102 = ssub.s32 %s15, 1
        // Predicated region
        $region13: #{tpu_custom_call.1} parent=11 // pred_check
          %p103 = pneg %p62
        $region14: #{tpu_custom_call.1} parent=11 // pred_check_branch
          %105 = sbr.rel (%p103) target = $region16
        $region15: #{tpu_custom_call.1} parent=11 // pred_region
          %s107 = ssub.s32 256, 256
          %108 = vsyncadd [#allocation7], %s107
          %s109 = sshll.u32 [#allocation6], 4
          %s110 = int_to_ptr.vmem [resolvable:$true] %s109
          %115 = dma.hbm_to_vmem [thread:$0]  %s1, 256, %s110, [#allocation7], 64, 64, 4
        $region16: #{tpu_custom_call.1} parent=11 // pred_fallthru
          _
      $region12: #{tpu_custom_call.1} parent=5 // pred_fallthru
        _
      %p116 = scmp.lt.s32.totalorder %s15, 2
      // Predicated region
      $region17: #{tpu_custom_call.1} parent=5 // pred_check
        %p117 = pneg %p116
      $region18: #{tpu_custom_call.1} parent=5 // pred_check_branch
        %119 = sbr.rel (%p117) target = $region20
      $region19: #{tpu_custom_call.1} parent=5 // pred_region
        // Predicated region
        $region21: #{tpu_custom_call.1} parent=19 // pred_check
          %p120 = pneg %p35
        $region22: #{tpu_custom_call.1} parent=19 // pred_check_branch
          %122 = sbr.rel (%p120) target = $region24
        $region23: #{tpu_custom_call.1} parent=19 // pred_region
          %s123 = sand.u32 %s25, 1
          %s124 = scalar_lea.sflag [#allocation4], %s123
          %s125 = sand.u32 %s25, 1
          %s126 = smul.addr %s125, 8
          %s127 = scalar_lea.vmem [#allocation3], %s126
          %s129 = ssub.s32 128, 128
          %130 = vsyncadd %s124, %s129
          %s131 = smul.addr %s15, 128
          %s132 = scalar_lea.hbm %s0, %s131
          %s134 = sshll.u32 %s127, 4
          %s135 = int_to_ptr.vmem [resolvable:$true] %s134
          %137 = dma.hbm_to_vmem [thread:$0]  %s132, 128, %s135, %s124
        $region24: #{tpu_custom_call.1} parent=19 // pred_fallthru
          _
      $region20: #{tpu_custom_call.1} parent=5 // pred_fallthru
        _
      %p138 = scmp.le.s32.totalorder 1, %s15
      %p139 = scmp.lt.s32.totalorder %s15, 3
      %p140 = pnand %p138, %p139
      %p141 = pneg %p140
      // Predicated region
      $region25: #{tpu_custom_call.1} parent=5 // pred_check
        _
      $region26: #{tpu_custom_call.1} parent=5 // pred_check_branch
        %143 = sbr.rel (%p140) target = $region28
      $region27: #{tpu_custom_call.1} parent=5 // pred_region
        %s144 = ssub.s32 %s15, 1
        %s145 = sand.u32 %s28, 1
        %s146 = scalar_lea.sflag [#allocation4], %s145
        %s147 = sand.u32 %s28, 1
        %s148 = smul.addr %s147, 8
        %s149 = scalar_lea.vmem [#allocation3], %s148
        // Predicated region
        $region29: #{tpu_custom_call.1} parent=27 // pred_check
          %p150 = pneg %p41
        $region30: #{tpu_custom_call.1} parent=27 // pred_check_branch
          %152 = sbr.rel (%p150) target = $region32
        $region31: #{tpu_custom_call.1} parent=27 // pred_region
          %153 = dma.done %s146, 128
        $region32: #{tpu_custom_call.1} parent=27 // pred_fallthru
          _
        // Predicated region
        $region33: #{tpu_custom_call.1} parent=27 // pred_check
          %p154 = pneg %p62
        $region34: #{tpu_custom_call.1} parent=27 // pred_check_branch
          %156 = sbr.rel (%p154) target = $region36
        $region35: #{tpu_custom_call.1} parent=27 // pred_region
          %157 = dma.done [#allocation7], 256
        $region36: #{tpu_custom_call.1} parent=27 // pred_fallthru
          _
        %s158 = sand.u32 %s28, 1
        %s159 = scalar_lea.sflag [#allocation4], %s158
        %s160 = sand.u32 %s28, 1
        %s161 = smul.addr %s160, 8
        %s162 = scalar_lea.vmem [#allocation3], %s161
        %p163 = pneg %p41
        %p164 = pneg %p38
        %p165 = pneg %p62
        %p166 = pneg %p59
        %p167 = pneg %p88
        %p168 = pneg %p85
        %s169 = sand.u32 %s75, 1
        %s170 = scalar_lea.sflag [#allocation5], %s169
        %s171 = sand.u32 %s75, 1
        %s172 = smul.addr %s171, 8
        %s173 = scalar_lea.vmem [#allocation8], %s172
        %v175 = vld [vmem:[%s149] sm:$0xff]
        %v176 = vpack.c.bf16 %v175, %v175
        %v177 = vld [vmem:[#allocation6] sm:$0xf]
        %v178 = vld [vmem:[#allocation6 + $0x4] sm:$0xf]
        %v179 = vld [vmem:[#allocation6 + $0x8] sm:$0xf]
        %v180 = vld [vmem:[#allocation6 + $0xc] sm:$0xf]
        %v185 = vunpack.c.l.b16 %v177
        %v186 = vunpack.c.l.b16 %v178
        %v187 = vunpack.c.l.b16 %v179
        %v188 = vunpack.c.l.b16 %v180
        %v189 = vpack.c.b16 %v186, %v185
        %v190 = vpack.c.b16 %v188, %v187
        %vm193 = vcmask 261120
        %v195 = vsel %vm193, %v176, 0
        %197 = vmatprep.subr.bf16.mxu0 0
        %198 = vmatpush1.bf16.msra.mxu0 %v189
        %199 = vmatprep.subr.bf16.mxu0 0
        %200 = vmatpush1.bf16.msra.mxu0 %v190
        %201 = vmatprep.subr.bf16.mxu0 0
        %202 = vmatpush1.bf16.msra.mxu0 0
        %203 = vmatprep.subr.bf16.mxu0 0
        %204 = vmatpush1.bf16.msra.mxu0 0
        %205 = vmatprep.subr.bf16.mxu0 0
        %206 = vmatpush1.bf16.msra.mxu0 0
        %207 = vmatprep.subr.bf16.mxu0 0
        %208 = vmatpush1.bf16.msra.mxu0 0
        %209 = vmatprep.subr.bf16.mxu0 0
        %210 = vmatpush1.bf16.msra.mxu0 0
        %211 = vmatprep.subr.bf16.mxu0 0
        %212 = vmatpush1.bf16.msra.mxu0 0
        %213 = vmatprep.subr.bf16.mxu0 0
        %214 = vmatpush1.bf16.msra.mxu0 0
        %215 = vmatprep.subr.bf16.mxu0 0
        %216 = vmatpush1.bf16.msra.mxu0 0
        %217 = vmatprep.subr.bf16.mxu0 0
        %218 = vmatpush1.bf16.msra.mxu0 0
        %219 = vmatprep.subr.bf16.mxu0 0
        %220 = vmatpush1.bf16.msra.mxu0 0
        %221 = vmatprep.subr.bf16.mxu0 0
        %222 = vmatpush1.bf16.msra.mxu0 0
        %223 = vmatprep.subr.bf16.mxu0 0
        %224 = vmatpush1.bf16.msra.mxu0 0
        %225 = vmatprep.subr.bf16.mxu0 0
        %226 = vmatpush1.bf16.msra.mxu0 0
        %227 = vmatprep.subr.bf16.mxu0 0
        %228 = vmatpush1.bf16.msra.mxu0 0
        %229 = vmatprep.mubr.bf16.mxu0 0
        %230 = vmatmul.mubr.bf16.gmra.mrb[0].mxu0 %v195
        %v231 = vpop.f32.mrb[0].mxu0
        %v232 = vadd.f32 0.0, %v231
        %v233 = vpop.f32.mrb[0].mxu0
        %v234 = vpop.f32.mrb[0].mxu0
        %v235 = vpop.f32.mrb[0].mxu0
        %236 = vdwg.mxu0
        %v237 = vpack.c.bf16 %v232, %v232
        %vm238 = vcmask 781312
        %239 = vst.msk [vmem:[#allocation2] sm:$0xf] %vm238, %v237
        %v240 = vld [vmem:[#allocation2] sm:$0xf]
        %v242 = vunpack.c.l.b16 %v240
        %v243 = vpack.c.b16 %v242, %v242
        %244 = vrot.lane.b32.xlu0 %v243, 96
        %v245 = vpop.permute.xlu0 %244
        %v247 = vsel %vm193, %v240, 0
        %v250 = vsel %vm193, %v245, 0
        %252 = vmatprep.subr.bf16.mxu0 0
        %253 = vmatpush1.bf16.xpose.msra.mxu0 %v250
        %254 = vmatprep.subr.bf16.mxu0 0
        %255 = vmatpush1.bf16.xpose.msra.mxu0 0
        %256 = vmatprep.subr.bf16.mxu0 0
        %257 = vmatpush1.bf16.xpose.msra.mxu0 0
        %258 = vmatprep.subr.bf16.mxu0 0
        %259 = vmatpush1.bf16.xpose.msra.mxu0 0
        %260 = vmatprep.subr.bf16.mxu0 0
        %261 = vmatpush1.bf16.xpose.msra.mxu0 0
        %262 = vmatprep.subr.bf16.mxu0 0
        %263 = vmatpush1.bf16.xpose.msra.mxu0 0
        %264 = vmatprep.subr.bf16.mxu0 0
        %265 = vmatpush1.bf16.xpose.msra.mxu0 0
        %266 = vmatprep.subr.bf16.mxu0 0
        %267 = vmatpush1.bf16.xpose.msra.mxu0 0
        %268 = vmatprep.subr.bf16.mxu0 0
        %269 = vmatpush1.bf16.xpose.msra.mxu0 0
        %270 = vmatprep.subr.bf16.mxu0 0
        %271 = vmatpush1.bf16.xpose.msra.mxu0 0
        %272 = vmatprep.subr.bf16.mxu0 0
        %273 = vmatpush1.bf16.xpose.msra.mxu0 0
        %274 = vmatprep.subr.bf16.mxu0 0
        %275 = vmatpush1.bf16.xpose.msra.mxu0 0
        %276 = vmatprep.subr.bf16.mxu0 0
        %277 = vmatpush1.bf16.xpose.msra.mxu0 0
        %278 = vmatprep.subr.bf16.mxu0 0
        %279 = vmatpush1.bf16.xpose.msra.mxu0 0
        %280 = vmatprep.subr.bf16.mxu0 0
        %281 = vmatpush1.bf16.xpose.msra.mxu0 0
        %282 = vmatprep.subr.bf16.mxu0 0
        %283 = vmatpush1.bf16.xpose.msra.mxu0 0
        %284 = vmatprep.mubr.bf16.mxu0 0
        %285 = vmatmul.mubr.bf16.gmra.mrb[0].mxu0 %v247
        %v286 = vpop.f32.mrb[0].mxu0
        %v287 = vadd.f32 0.0, %v286
        %v288 = vpop.f32.mrb[0].mxu0
        %v289 = vpop.f32.mrb[0].mxu0
        %v290 = vpop.f32.mrb[0].mxu0
        %291 = vdwg.mxu0
        %vm292 = vcmask 64512
        %v293 = vsel %vm292, %v287, -inf
        %294 = vmax.xlane.f32.xlu0 %v293
        %v295 = vpop.xlane.xlu0 %294
        %v296 = vsub.f32 %v287, %v295
        %v297 = vmul.f32 %v296, 1.442695
        %v298 = vpow.pop %v297
        %v299 = vsel %vm292, %v298, 0.0
        %300 = vadd.xlane.f32.xlu0 %v299
        %v301 = vpop.xlane.xlu0 %300
        %v302 = vpack.c.bf16 %v298, %v298
        %303 = vrot.lane.b32.xlu0 %v243, 64
        %v304 = vpop.permute.xlu0 %303
        %v306 = vsel %vm292, %v302, 0
        %vm308 = vcmask 1043456
        %v310 = vsel %vm308, %v304, 0
        %312 = vmatprep.subr.bf16.mxu0 0
        %313 = vmatpush1.bf16.msra.mxu0 %v310
        %314 = vmatprep.subr.bf16.mxu0 0
        %315 = vmatpush1.bf16.msra.mxu0 0
        %316 = vmatprep.subr.bf16.mxu0 0
        %317 = vmatpush1.bf16.msra.mxu0 0
        %318 = vmatprep.subr.bf16.mxu0 0
        %319 = vmatpush1.bf16.msra.mxu0 0
        %320 = vmatprep.subr.bf16.mxu0 0
        %321 = vmatpush1.bf16.msra.mxu0 0
        %322 = vmatprep.subr.bf16.mxu0 0
        %323 = vmatpush1.bf16.msra.mxu0 0
        %324 = vmatprep.subr.bf16.mxu0 0
        %325 = vmatpush1.bf16.msra.mxu0 0
        %326 = vmatprep.subr.bf16.mxu0 0
        %327 = vmatpush1.bf16.msra.mxu0 0
        %328 = vmatprep.subr.bf16.mxu0 0
        %329 = vmatpush1.bf16.msra.mxu0 0
        %330 = vmatprep.subr.bf16.mxu0 0
        %331 = vmatpush1.bf16.msra.mxu0 0
        %332 = vmatprep.subr.bf16.mxu0 0
        %333 = vmatpush1.bf16.msra.mxu0 0
        %334 = vmatprep.subr.bf16.mxu0 0
        %335 = vmatpush1.bf16.msra.mxu0 0
        %336 = vmatprep.subr.bf16.mxu0 0
        %337 = vmatpush1.bf16.msra.mxu0 0
        %338 = vmatprep.subr.bf16.mxu0 0
        %339 = vmatpush1.bf16.msra.mxu0 0
        %340 = vmatprep.subr.bf16.mxu0 0
        %341 = vmatpush1.bf16.msra.mxu0 0
        %342 = vmatprep.subr.bf16.mxu0 0
        %343 = vmatpush1.bf16.msra.mxu0 0
        %344 = vmatprep.mubr.bf16.mxu0 0
        %345 = vmatmul.mubr.bf16.gmra.mrb[0].mxu0 %v306
        %v346 = vpop.f32.mrb[0].mxu0
        %v347 = vadd.f32 0.0, %v346
        %v348 = vpop.f32.mrb[0].mxu0
        %v349 = vpop.f32.mrb[0].mxu0
        %v350 = vpop.f32.mrb[0].mxu0
        %351 = vdwg.mxu0
        %v352 = vrcp.pop %v301
        %v353 = vmul.f32 %v347, %v352
        %354 = vst.msk [vmem:[%s173] sm:$0xff] %vm193, %v353
        %s355 = sand.u32 %s75, 1
        %s356 = scalar_lea.sflag [#allocation5], %s355
        %s357 = sand.u32 %s75, 1
        %s358 = smul.addr %s357, 8
        %s359 = scalar_lea.vmem [#allocation8], %s358
        // Predicated region
        $region37: #{tpu_custom_call.1} parent=27 // pred_check
          %p360 = pneg %p85
        $region38: #{tpu_custom_call.1} parent=27 // pred_check_branch
          %362 = sbr.rel (%p360) target = $region40
        $region39: #{tpu_custom_call.1} parent=27 // pred_region
          %s364 = ssub.s32 128, 128
          %365 = vsyncadd %s356, %s364
          %s366 = smul.addr %s20, 128
          %s367 = scalar_lea.hbm %s2, %s366
          %s369 = sshll.u32 %s359, 4
          %s370 = int_to_ptr.vmem [resolvable:$true] %s369
          %372 = dma.vmem_to_hbm [thread:$0]  %s370, 128, %s367, %s356
        $region40: #{tpu_custom_call.1} parent=27 // pred_fallthru
          _
      $region28: #{tpu_custom_call.1} parent=5 // pred_fallthru
        _
      %p373 = scmp.le.s32.totalorder 2, %s15
      // Predicated region
      $region41: #{tpu_custom_call.1} parent=5 // pred_check
        %p374 = pneg %p373
      $region42: #{tpu_custom_call.1} parent=5 // pred_check_branch
        %376 = sbr.rel (%p374) target = $region44
      $region43: #{tpu_custom_call.1} parent=5 // pred_region
        %s377 = ssub.s32 %s15, 2
        // Predicated region
        $region45: #{tpu_custom_call.1} parent=43 // pred_check
          %p378 = pneg %p91
        $region46: #{tpu_custom_call.1} parent=43 // pred_check_branch
          %380 = sbr.rel (%p378) target = $region48
        $region47: #{tpu_custom_call.1} parent=43 // pred_region
          %s381 = sand.u32 %s76, 1
          %s382 = scalar_lea.sflag [#allocation5], %s381
          %s383 = sand.u32 %s76, 1
          %s384 = smul.addr %s383, 8
          %s385 = scalar_lea.vmem [#allocation8], %s384
          %386 = dma.done %s382, 128
        $region48: #{tpu_custom_call.1} parent=43 // pred_fallthru
          _
      $region44: #{tpu_custom_call.1} parent=5 // pred_fallthru
        _
    $region6: #{tpu_custom_call.1} parent=1 // loop_footer
      %s19 = sadd.s32 1, %s15
    $region7: #{tpu_custom_call.1} parent=1 // loop_footer_branch
      %14 = sbr.rel target = $region3
    $region8: #{tpu_custom_call.1} parent=1 // loop_exit
      _
    %387 = vsyncpa [#allocation4], 1
    %s388 = scalar_lea.sflag [#allocation4], 1
    %389 = vsyncpa %s388, 1
    %390 = vsyncpa [#allocation7], 1
    %391 = vsyncpa [#allocation5], 1
    %s392 = scalar_lea.sflag [#allocation5], 1
    %393 = vsyncpa %s392, 1

</llo_original>
